<compile_context>
chip_gen: v7x
topology: tpu7x:2x2x1
jax: 0.10.0
libtpu: 0.0.40
codegen_flags: <defaults>
</compile_context>

<pallas_src>
import jax
import jax.numpy as jnp
from jax.experimental import pallas as pl
from jax.experimental.pallas import tpu as pltpu

# ----- hyperparameters (the original file reads these from module globals) ---
STATE_CHANNELS = 4
ENV_SIZE = (4, 4)                      # H, W
GLOBAL_HIDDEN = 32
VALUE_HIDDEN = 32
POLICY_HIDDEN = 32                     # must equal VALUE_HIDDEN (bn2p uses it)
VALUE_OUT = 8
POLICY_OUT = 8
BATCH = 8

D_IN = STATE_CHANNELS * ENV_SIZE[0] * ENV_SIZE[1]     # 64
H1 = 2 * GLOBAL_HIDDEN                                # fused hidden-1 width = 64
H2 = VALUE_HIDDEN + POLICY_HIDDEN                     # fused hidden-2 width = 64
LANES = H1                                            # lane width of the packed slabs
OUT_W = POLICY_OUT + VALUE_OUT                        # live output lanes = 16
BN_EPS = 1e-5

assert H1 == H2 == LANES == D_IN, "packing below assumes a uniform 64-lane slab"

# row offsets inside the bf16 weight slab
_R_W1 = 0
_R_WH = _R_W1 + D_IN          # 64
_R_WO = _R_WH + H1            # 128
N_W_ROWS = _R_WO + H2         # 192


# --------------------------------------------------------------------------- #
# Kernel
# --------------------------------------------------------------------------- #
def prediction_kernel(x_ref, w_ref, rows_ref, out_ref):
    x = x_ref[...]                                    # [B, D_IN] bf16

    # Static, tile-aligned slices of the bf16 weight slab.
    w1 = w_ref[_R_W1:_R_W1 + D_IN, :]                 # [D_IN, 64] fused layer-1 weights
    wh = w_ref[_R_WH:_R_WH + H1, :]                   # [64, 64]   block-diag hidden weights
    wo = w_ref[_R_WO:_R_WO + H2, :]                   # [64, 64]   output weights (lanes 0:16 live)

    rows = rows_ref[...]                              # [8, 64] f32 bias / gamma / beta rows
    b1, g1, be1 = rows[0:1, :], rows[1:2, :], rows[2:3, :]
    bh, g2, be2 = rows[3:4, :], rows[4:5, :], rows[5:6, :]
    bo = rows[6:7, :]                                 # [1, 64] output bias (zeros past lane 16)

    def bn_relu(h, g, b):
        # BatchNorm1d training mode: biased batch var, eps=1e-5, then ReLU.
        # One-pass variance so the two cross-sublane reductions issue
        # back-to-back; fold gamma into a single [1,64] scale row, then one
        # multiply + add per element.
        m = jnp.mean(h, axis=0, keepdims=True)
        var = jnp.mean(h * h, axis=0, keepdims=True) - m * m
        scale = g * jax.lax.rsqrt(var + BN_EPS)       # rsqrt -> EUP slot
        shift = b - m * scale
        return jnp.maximum(h * scale + shift, 0.0)

    # ---- fused (value | policy) MLP chain: one bf16 MXU dot per layer, f32 acc ----
    h = jnp.dot(x, w1, preferred_element_type=jnp.float32) + b1
    h = bn_relu(h, g1, be1)
    h = jnp.dot(h.astype(jnp.bfloat16), wh, preferred_element_type=jnp.float32) + bh
    h = bn_relu(h, g2, be2)
    z = jnp.dot(h.astype(jnp.bfloat16), wo, preferred_element_type=jnp.float32) + bo  # [B, 64]

    # Lane mask: lanes 0:8 = policy logits, lanes 8:16 = value logits.
    lane = jax.lax.broadcasted_iota(jnp.int32, z.shape, dimension=1)
    is_policy = lane < POLICY_OUT

    # masked softmax over the policy lanes (exact division -> rows sum to 1)
    zmax = jnp.max(jnp.where(is_policy, z, jnp.float32(-1e30)), axis=-1, keepdims=True)
    e = jnp.exp(z - zmax)
    denom = jnp.sum(jnp.where(is_policy, e, 0.0), axis=-1, keepdims=True)
    p = e / denom

    # exact sigmoid over the whole tile (only lanes 8:16 are consumed)
    v = 1.0 / (1.0 + jnp.exp(-z))

    # Single lane-dense [B, 64] store; no concatenate, no lane shuffles.
    out_ref[...] = jnp.where(is_policy, p, v).astype(out_ref.dtype)


# --------------------------------------------------------------------------- #
# Wrapper
# --------------------------------------------------------------------------- #
def pack_params(params):
    """Fuse the two heads and pack everything into:
         - a bf16 [192, 64] weight slab (3 x 64-row blocks),
         - an  f32 [  8, 64] bias/gamma/beta slab.
    """
    f32 = jnp.float32

    # layer 1: concat along output dim (value lanes 0:32, policy lanes 32:64)
    W1 = jnp.concatenate([params["w1v"], params["w1p"]], axis=1)           # [D_IN, 64]

    # layer 2: block-diagonal
    Wh = jnp.zeros((H1, H2), f32)
    Wh = Wh.at[:GLOBAL_HIDDEN, :VALUE_HIDDEN].set(params["whv"])
    Wh = Wh.at[GLOBAL_HIDDEN:, VALUE_HIDDEN:].set(params["whp"])

    # layer 3: policy -> output lanes 0:8, value -> output lanes 8:16, rest 0
    Wo = jnp.zeros((H2, LANES), f32)
    Wo = Wo.at[:VALUE_HIDDEN, POLICY_OUT:OUT_W].set(params["wov"])
    Wo = Wo.at[VALUE_HIDDEN:, :POLICY_OUT].set(params["wop"])

    w_slab = jnp.concatenate([W1, Wh, Wo], axis=0).astype(jnp.bfloat16)    # [192, 64] bf16

    def row(*parts):
        r = jnp.concatenate([jnp.asarray(q, f32).reshape(-1) for q in parts])
        return jnp.pad(r, (0, LANES - r.shape[0])).reshape(1, LANES)

    rows = jnp.concatenate(
        [
            row(params["b1v"], params["b1p"]),
            row(params["g1v"], params["g1p"]),
            row(params["be1v"], params["be1p"]),
            row(params["bhv"], params["bhp"]),
            row(params["g2v"], params["g2p"]),
            row(params["be2v"], params["be2p"]),
            row(params["bop"], params["bov"]),     # output bias, packed policy|value, zero-padded
            jnp.zeros((1, LANES), f32),            # padding row -> 8 rows total
        ],
        axis=0,
    )                                                                      # [8, 64] f32
    return w_slab, rows


def prediction_forward(state, w_slab, rows):
    """state: [B, C, H, W] float32.  Returns (p [B, POLICY_OUT], v [B, VALUE_OUT])."""
    B = state.shape[0]
    x = state.reshape(B, -1).astype(jnp.bfloat16)   # torch.flatten(state, start_dim=1)

    vmem = pl.BlockSpec(memory_space=pltpu.MemorySpace.VMEM)
    out = pl.pallas_call(
        prediction_kernel,
        out_shape=jax.ShapeDtypeStruct((B, LANES), jnp.float32),   # lane-dense [B, 64]
        in_specs=[vmem, vmem, vmem],
        out_specs=vmem,
    )(x, w_slab, rows)

    p = out[:, :POLICY_OUT]
    v = out[:, POLICY_OUT:OUT_W]
    return p, v


# --------------------------------------------------------------------------- #
# Parameter init (shapes from Prediction.__init__) and pure-JAX references
# --------------------------------------------------------------------------- #
def init_params(key):
    ks = jax.random.split(key, 12)

    def lin(k, fan_in, fan_out):
        kw, kb = jax.random.split(k)
        bound = 1.0 / jnp.sqrt(fan_in)
        # stored as [in, out] (transposed vs. PyTorch [out, in])
        w = jax.random.uniform(kw, (fan_in, fan_out), jnp.float32, -bound, bound)
        b = jax.random.uniform(kb, (1, fan_out), jnp.float32, -bound, bound)
        return w, b

    def bn(k, n):
        kg, kb = jax.random.split(k)
        gamma = 1.0 + 0.1 * jax.random.normal(kg, (1, n), jnp.float32)
        beta = 0.1 * jax.random.normal(kb, (1, n), jnp.float32)
        return gamma, beta

    w1v, b1v = lin(ks[0], D_IN, GLOBAL_HIDDEN)
    g1v, be1v = bn(ks[1], GLOBAL_HIDDEN)
    whv, bhv = lin(ks[2], GLOBAL_HIDDEN, VALUE_HIDDEN)
    g2v, be2v = bn(ks[3], VALUE_HIDDEN)
    wov, bov = lin(ks[4], VALUE_HIDDEN, VALUE_OUT)

    w1p, b1p = lin(ks[5], D_IN, GLOBAL_HIDDEN)
    g1p, be1p = bn(ks[6], GLOBAL_HIDDEN)
    whp, bhp = lin(ks[7], GLOBAL_HIDDEN, POLICY_HIDDEN)
    g2p, be2p = bn(ks[8], VALUE_HIDDEN)   # bn2p = BatchNorm1d(value_hidden_dim)
    wop, bop = lin(ks[9], POLICY_HIDDEN, POLICY_OUT)

    return dict(
        w1v=w1v, b1v=b1v, g1v=g1v, be1v=be1v,
        whv=whv, bhv=bhv, g2v=g2v, be2v=be2v,
        wov=wov, bov=bov,
        w1p=w1p, b1p=b1p, g1p=g1p, be1p=be1p,
        whp=whp, bhp=bhp, g2p=g2p, be2p=be2p,
        wop=wop, bop=bop,
    )


def _reference(state, params, matmul_dtype=jnp.float32):
    """Pure-JAX reference (unfused, unpacked).

    matmul_dtype=jnp.float32   -> full-precision semantic reference.
    matmul_dtype=jnp.bfloat16  -> mirrors the kernel's bf16 MXU operands
                                  (f32 accumulation), for a tight check.
    """
    x = state.reshape(state.shape[0], -1)

    def dot(a, w):
        return jnp.dot(a.astype(matmul_dtype), w.astype(matmul_dtype),
                       preferred_element_type=jnp.float32)

    def bn(h, g, b):
        m = jnp.mean(h, axis=0, keepdims=True)
        var = jnp.mean((h - m) ** 2, axis=0, keepdims=True)
        return g * (h - m) / jnp.sqrt(var + BN_EPS) + b

    relu = lambda t: jnp.maximum(t, 0.0)

    v = relu(bn(dot(x, params["w1v"]) + params["b1v"], params["g1v"], params["be1v"]))
    v = relu(bn(dot(v, params["whv"]) + params["bhv"], params["g2v"], params["be2v"]))
    v = jax.nn.sigmoid(dot(v, params["wov"]) + params["bov"])

    p = relu(bn(dot(x, params["w1p"]) + params["b1p"], params["g1p"], params["be1p"]))
    p = relu(bn(dot(p, params["whp"]) + params["bhp"], params["g2p"], params["be2p"]))
    p = jax.nn.softmax(dot(p, params["wop"]) + params["bop"], axis=1)
    return p, v


if __name__ == "__main__":
    key = jax.random.PRNGKey(0)
    k_state, k_params = jax.random.split(key)

    state = jax.random.normal(
        k_state, (BATCH, STATE_CHANNELS, ENV_SIZE[0], ENV_SIZE[1]), jnp.float32
    )
    params = init_params(k_params)
    w_slab, rows = pack_params(params)

    p, v = prediction_forward(state, w_slab, rows)
    p = jax.block_until_ready(p)
    v = jax.block_until_ready(v)

    assert p.shape == (BATCH, POLICY_OUT) and v.shape == (BATCH, VALUE_OUT)

    # Tight check against a reference that applies the same bf16 rounding to
    # the matmul operands (everything else f32).
    p_bf, v_bf = _reference(state, params, matmul_dtype=jnp.bfloat16)
    assert jnp.allclose(p, p_bf, atol=2e-3, rtol=2e-3)
    assert jnp.allclose(v, v_bf, atol=2e-3, rtol=2e-3)

    # Sanity check against the full-f32 semantic reference (bf16 weights only
    # move probabilities by a fraction of a percent).
    p_ref, v_ref = _reference(state, params)
    assert jnp.allclose(p, p_ref, atol=3e-2)
    assert jnp.allclose(v, v_ref, atol=3e-2)

    # Exact-division softmax: rows must sum to 1 tightly.
    assert jnp.allclose(jnp.sum(p, axis=1), 1.0, atol=1e-3)

    print("KERNEL_OK")
</pallas_src>

<mosaic_0001>
module attributes {stable_mosaic.version = 11 : i64} {
  func.func @prediction_kernel(%arg0: memref<8x64xbf16, #tpu.memory_space<vmem>>, %arg1: memref<192x64xbf16, #tpu.memory_space<vmem>>, %arg2: memref<8x64xf32, #tpu.memory_space<vmem>>, %arg3: memref<8x64xf32, #tpu.memory_space<vmem>>) attributes {dimension_semantics = [], scalar_prefetch = 0 : i64, scratch_operands = 0 : i64, tpu.core_type = #tpu.core_type<tc>} {
    %c0 = arith.constant 0 : index
    %c0_0 = arith.constant 0 : index
    %0 = vector.load %arg0[%c0, %c0_0] : memref<8x64xbf16, #tpu.memory_space<vmem>>, vector<8x64xbf16>
    %c0_1 = arith.constant 0 : index
    %c0_2 = arith.constant 0 : index
    %1 = vector.load %arg1[%c0_1, %c0_2] : memref<192x64xbf16, #tpu.memory_space<vmem>>, vector<64x64xbf16>
    %c64 = arith.constant 64 : index
    %c0_3 = arith.constant 0 : index
    %2 = vector.load %arg1[%c64, %c0_3] : memref<192x64xbf16, #tpu.memory_space<vmem>>, vector<64x64xbf16>
    %c128 = arith.constant 128 : index
    %c0_4 = arith.constant 0 : index
    %3 = vector.load %arg1[%c128, %c0_4] : memref<192x64xbf16, #tpu.memory_space<vmem>>, vector<64x64xbf16>
    %c0_5 = arith.constant 0 : index
    %c0_6 = arith.constant 0 : index
    %4 = vector.load %arg2[%c0_5, %c0_6] : memref<8x64xf32, #tpu.memory_space<vmem>>, vector<8x64xf32>
    %5 = vector.extract_strided_slice %4 {offsets = [0, 0], sizes = [1, 64], strides = [1, 1]} : vector<8x64xf32> to vector<1x64xf32>
    %6 = vector.extract_strided_slice %4 {offsets = [1, 0], sizes = [1, 64], strides = [1, 1]} : vector<8x64xf32> to vector<1x64xf32>
    %7 = vector.extract_strided_slice %4 {offsets = [2, 0], sizes = [1, 64], strides = [1, 1]} : vector<8x64xf32> to vector<1x64xf32>
    %8 = vector.extract_strided_slice %4 {offsets = [3, 0], sizes = [1, 64], strides = [1, 1]} : vector<8x64xf32> to vector<1x64xf32>
    %9 = vector.extract_strided_slice %4 {offsets = [4, 0], sizes = [1, 64], strides = [1, 1]} : vector<8x64xf32> to vector<1x64xf32>
    %10 = vector.extract_strided_slice %4 {offsets = [5, 0], sizes = [1, 64], strides = [1, 1]} : vector<8x64xf32> to vector<1x64xf32>
    %11 = vector.extract_strided_slice %4 {offsets = [6, 0], sizes = [1, 64], strides = [1, 1]} : vector<8x64xf32> to vector<1x64xf32>
    %cst = arith.constant dense<0.000000e+00> : vector<8x64xf32>
    %12 = tpu.matmul %0, %1, %cst {dimension_numbers = #tpu.dot_dimension_numbers<[1], [0], [0], [1], [0, 0, 1, 1], [], []>} : vector<8x64xbf16>, vector<64x64xbf16>, vector<8x64xf32> -> vector<8x64xf32>
    %13 = vector.broadcast %5 : vector<1x64xf32> to vector<8x64xf32>
    %14 = arith.addf %12, %13 : vector<8x64xf32>
    %cst_7 = arith.constant dense<0.000000e+00> : vector<64xf32>
    %15 = vector.multi_reduction <add>, %14, %cst_7 [0] : vector<8x64xf32> to vector<64xf32>
    %16 = vector.shape_cast %15 : vector<64xf32> to vector<1x64xf32>
    %cst_8 = arith.constant 8.000000e+00 : f32
    %17 = vector.broadcast %cst_8 : f32 to vector<1x64xf32>
    %18 = arith.divf %16, %17 : vector<1x64xf32>
    %19 = arith.mulf %14, %14 : vector<8x64xf32>
    %cst_9 = arith.constant dense<0.000000e+00> : vector<64xf32>
    %20 = vector.multi_reduction <add>, %19, %cst_9 [0] : vector<8x64xf32> to vector<64xf32>
    %21 = vector.shape_cast %20 : vector<64xf32> to vector<1x64xf32>
    %cst_10 = arith.constant 8.000000e+00 : f32
    %22 = vector.broadcast %cst_10 : f32 to vector<1x64xf32>
    %23 = arith.divf %21, %22 : vector<1x64xf32>
    %24 = arith.mulf %18, %18 : vector<1x64xf32>
    %25 = arith.subf %23, %24 : vector<1x64xf32>
    %cst_11 = arith.constant 9.99999974E-6 : f32
    %26 = vector.broadcast %cst_11 : f32 to vector<1x64xf32>
    %27 = arith.addf %25, %26 : vector<1x64xf32>
    %28 = math.rsqrt %27 : vector<1x64xf32>
    %29 = arith.mulf %6, %28 : vector<1x64xf32>
    %30 = arith.mulf %18, %29 : vector<1x64xf32>
    %31 = arith.subf %7, %30 : vector<1x64xf32>
    %32 = vector.broadcast %29 : vector<1x64xf32> to vector<8x64xf32>
    %33 = arith.mulf %14, %32 : vector<8x64xf32>
    %34 = vector.broadcast %31 : vector<1x64xf32> to vector<8x64xf32>
    %35 = arith.addf %33, %34 : vector<8x64xf32>
    %cst_12 = arith.constant 0.000000e+00 : f32
    %36 = vector.broadcast %cst_12 : f32 to vector<8x64xf32>
    %37 = arith.maximumf %35, %36 : vector<8x64xf32>
    %38 = arith.truncf %37 : vector<8x64xf32> to vector<8x64xbf16>
    %cst_13 = arith.constant dense<0.000000e+00> : vector<8x64xf32>
    %39 = tpu.matmul %38, %2, %cst_13 {dimension_numbers = #tpu.dot_dimension_numbers<[1], [0], [0], [1], [0, 0, 1, 1], [], []>} : vector<8x64xbf16>, vector<64x64xbf16>, vector<8x64xf32> -> vector<8x64xf32>
    %40 = vector.broadcast %8 : vector<1x64xf32> to vector<8x64xf32>
    %41 = arith.addf %39, %40 : vector<8x64xf32>
    %cst_14 = arith.constant dense<0.000000e+00> : vector<64xf32>
    %42 = vector.multi_reduction <add>, %41, %cst_14 [0] : vector<8x64xf32> to vector<64xf32>
    %43 = vector.shape_cast %42 : vector<64xf32> to vector<1x64xf32>
    %cst_15 = arith.constant 8.000000e+00 : f32
    %44 = vector.broadcast %cst_15 : f32 to vector<1x64xf32>
    %45 = arith.divf %43, %44 : vector<1x64xf32>
    %46 = arith.mulf %41, %41 : vector<8x64xf32>
    %cst_16 = arith.constant dense<0.000000e+00> : vector<64xf32>
    %47 = vector.multi_reduction <add>, %46, %cst_16 [0] : vector<8x64xf32> to vector<64xf32>
    %48 = vector.shape_cast %47 : vector<64xf32> to vector<1x64xf32>
    %cst_17 = arith.constant 8.000000e+00 : f32
    %49 = vector.broadcast %cst_17 : f32 to vector<1x64xf32>
    %50 = arith.divf %48, %49 : vector<1x64xf32>
    %51 = arith.mulf %45, %45 : vector<1x64xf32>
    %52 = arith.subf %50, %51 : vector<1x64xf32>
    %cst_18 = arith.constant 9.99999974E-6 : f32
    %53 = vector.broadcast %cst_18 : f32 to vector<1x64xf32>
    %54 = arith.addf %52, %53 : vector<1x64xf32>
    %55 = math.rsqrt %54 : vector<1x64xf32>
    %56 = arith.mulf %9, %55 : vector<1x64xf32>
    %57 = arith.mulf %45, %56 : vector<1x64xf32>
    %58 = arith.subf %10, %57 : vector<1x64xf32>
    %59 = vector.broadcast %56 : vector<1x64xf32> to vector<8x64xf32>
    %60 = arith.mulf %41, %59 : vector<8x64xf32>
    %61 = vector.broadcast %58 : vector<1x64xf32> to vector<8x64xf32>
    %62 = arith.addf %60, %61 : vector<8x64xf32>
    %cst_19 = arith.constant 0.000000e+00 : f32
    %63 = vector.broadcast %cst_19 : f32 to vector<8x64xf32>
    %64 = arith.maximumf %62, %63 : vector<8x64xf32>
    %65 = arith.truncf %64 : vector<8x64xf32> to vector<8x64xbf16>
    %cst_20 = arith.constant dense<0.000000e+00> : vector<8x64xf32>
    %66 = tpu.matmul %65, %3, %cst_20 {dimension_numbers = #tpu.dot_dimension_numbers<[1], [0], [0], [1], [0, 0, 1, 1], [], []>} : vector<8x64xbf16>, vector<64x64xbf16>, vector<8x64xf32> -> vector<8x64xf32>
    %67 = vector.broadcast %11 : vector<1x64xf32> to vector<8x64xf32>
    %68 = arith.addf %66, %67 : vector<8x64xf32>
    %69 = tpu.iota {dimensions = array<i32: 1>} : vector<8x64xi32>
    %c8_i32 = arith.constant 8 : i32
    %70 = vector.broadcast %c8_i32 : i32 to vector<8x64xi32>
    %71 = arith.cmpi slt, %69, %70 : vector<8x64xi32>
    %cst_21 = arith.constant -1.000000e+30 : f32
    %72 = vector.broadcast %cst_21 : f32 to vector<8x64xf32>
    %73 = arith.select %71, %68, %72 : vector<8x64xi1>, vector<8x64xf32>
    %cst_22 = arith.constant dense<0xFF800000> : vector<8xf32>
    %74 = vector.multi_reduction <maximumf>, %73, %cst_22 [1] : vector<8x64xf32> to vector<8xf32>
    %75 = vector.shape_cast %74 : vector<8xf32> to vector<8x1xf32>
    %76 = vector.broadcast %75 : vector<8x1xf32> to vector<8x64xf32>
    %77 = arith.subf %68, %76 : vector<8x64xf32>
    %78 = math.exp %77 : vector<8x64xf32>
    %cst_23 = arith.constant 0.000000e+00 : f32
    %79 = vector.broadcast %cst_23 : f32 to vector<8x64xf32>
    %80 = arith.select %71, %78, %79 : vector<8x64xi1>, vector<8x64xf32>
    %cst_24 = arith.constant dense<0.000000e+00> : vector<8xf32>
    %81 = vector.multi_reduction <add>, %80, %cst_24 [1] : vector<8x64xf32> to vector<8xf32>
    %82 = vector.shape_cast %81 : vector<8xf32> to vector<8x1xf32>
    %83 = vector.broadcast %82 : vector<8x1xf32> to vector<8x64xf32>
    %84 = arith.divf %78, %83 : vector<8x64xf32>
    %cst_25 = arith.constant 0.000000e+00 : f32
    %85 = vector.broadcast %cst_25 : f32 to vector<8x64xf32>
    %86 = arith.subf %85, %68 : vector<8x64xf32>
    %87 = math.exp %86 : vector<8x64xf32>
    %cst_26 = arith.constant 1.000000e+00 : f32
    %88 = vector.broadcast %cst_26 : f32 to vector<8x64xf32>
    %89 = arith.addf %88, %87 : vector<8x64xf32>
    %cst_27 = arith.constant 1.000000e+00 : f32
    %90 = vector.broadcast %cst_27 : f32 to vector<8x64xf32>
    %91 = arith.divf %90, %89 : vector<8x64xf32>
    %92 = arith.select %71, %84, %91 : vector<8x64xi1>, vector<8x64xf32>
    %c0_28 = arith.constant 0 : index
    %c0_29 = arith.constant 0 : index
    %93 = vector.load %arg3[%c0_28, %c0_29] : memref<8x64xf32, #tpu.memory_space<vmem>>, vector<8x64xf32>
    tpu.vector_store %arg3[%c0_28, %c0_29], %92 {strides = array<i32>} : memref<8x64xf32, #tpu.memory_space<vmem>>, vector<8x64xf32>,
    return
  }
}

</mosaic_0001>

<llo_original>
// kernel: tpu_custom_call.1
$region0: #{tpu_custom_call.1}
  #allocation0 [shape = 'u32[]', space=smem, size = 0x4, offset = 0x4, fixed_abs, tag = 'smem constant byte address 0x4 - core index']
  #allocation1 [shape = 'u32[144,128]{1,0:T(1,128)}', space=vmem, size = 0x12000, scoped, tag = 'internal scratch']
  %s0 = inlined_call_operand.vmem [shape: bf16[8,64], index: 0, kind: input, shape index: {}]
  %s1 = inlined_call_operand.vmem [shape: bf16[192,64], index: 1, kind: input, shape index: {}]
  %s2 = inlined_call_operand.vmem [shape: f32[8,64], index: 2, kind: input, shape index: {}]
  %s3 = inlined_call_operand.hbm [shape: f32[8,64], index: 3, kind: output, shape index: {}]
  %s4 = sld [smem:[#allocation0]]
  $region22: #{tpu_custom_call.1} parent=0
    _
  %s6 = ssub.s32 1, %s4
  %s7 = scalar_select 0, %s6, %s4
  $region1: #{tpu_custom_call.1} parent=0
    #allocation2 [shape = 'u8[4096]{0}', space=vmem, size = 0x1000, scoped, tag = 'output window, operand 0, single buffered']
    #allocation3 [shape = 's32[1]{0}', space=sflag, size = 0x4, scoped, tag = 'scoped memory for tpu_custom_call.1']
    %8 = vsyncpa [#allocation3], 0
    // Predicated region
    $region2: #{tpu_custom_call.1} parent=1 // pred_check
      _
    $region3: #{tpu_custom_call.1} parent=1 // pred_check_branch
      %10 = sbr.rel (0) target = $region5
    $region4: #{tpu_custom_call.1} parent=1 // pred_region
      _
    $region5: #{tpu_custom_call.1} parent=1 // pred_fallthru
      _
    // Predicated region
    $region6: #{tpu_custom_call.1} parent=1 // pred_check
      _
    $region7: #{tpu_custom_call.1} parent=1 // pred_check_branch
      %12 = sbr.rel (0) target = $region9
    $region8: #{tpu_custom_call.1} parent=1 // pred_region
      _
    $region9: #{tpu_custom_call.1} parent=1 // pred_fallthru
      _
    // Predicated region
    $region10: #{tpu_custom_call.1} parent=1 // pred_check
      _
    $region11: #{tpu_custom_call.1} parent=1 // pred_check_branch
      %14 = sbr.rel (0) target = $region13
    $region12: #{tpu_custom_call.1} parent=1 // pred_region
      _
    $region13: #{tpu_custom_call.1} parent=1 // pred_fallthru
      _
    %v16 = vld [vmem:[%s0] sm:$0xf]
    %v17 = vld [vmem:[%s1] sm:$0xf]
    %v18 = vld [vmem:[%s1 + $0x4] sm:$0xf]
    %v19 = vld [vmem:[%s1 + $0x8] sm:$0xf]
    %v20 = vld [vmem:[%s1 + $0xc] sm:$0xf]
    %v21 = vld [vmem:[%s1 + $0x10] sm:$0xf]
    %v22 = vld [vmem:[%s1 + $0x14] sm:$0xf]
    %v23 = vld [vmem:[%s1 + $0x18] sm:$0xf]
    %v24 = vld [vmem:[%s1 + $0x1c] sm:$0xf]
    %v25 = vld [vmem:[%s1 + $0x20] sm:$0xf]
    %v26 = vld [vmem:[%s1 + $0x24] sm:$0xf]
    %v27 = vld [vmem:[%s1 + $0x28] sm:$0xf]
    %v28 = vld [vmem:[%s1 + $0x2c] sm:$0xf]
    %v29 = vld [vmem:[%s1 + $0x30] sm:$0xf]
    %v30 = vld [vmem:[%s1 + $0x34] sm:$0xf]
    %v31 = vld [vmem:[%s1 + $0x38] sm:$0xf]
    %v32 = vld [vmem:[%s1 + $0x3c] sm:$0xf]
    %v33 = vld [vmem:[%s1 + $0x40] sm:$0xf]
    %v34 = vld [vmem:[%s1 + $0x44] sm:$0xf]
    %v35 = vld [vmem:[%s1 + $0x48] sm:$0xf]
    %v36 = vld [vmem:[%s1 + $0x4c] sm:$0xf]
    %v37 = vld [vmem:[%s1 + $0x50] sm:$0xf]
    %v38 = vld [vmem:[%s1 + $0x54] sm:$0xf]
    %v39 = vld [vmem:[%s1 + $0x58] sm:$0xf]
    %v40 = vld [vmem:[%s1 + $0x5c] sm:$0xf]
    %v41 = vld [vmem:[%s2] sm:$0xff]
    %v42 = vlaneseq
    %v43 = vshrl.u32 %v42, 7
    %v44 = vsub.s32 0, %v43
    %v45 = vrot.slane %v41, %v44
    %v54 = vunpack.c.l.b16 %v17
    %v55 = vunpack.c.l.b16 %v18
    %v56 = vunpack.c.l.b16 %v19
    %v57 = vunpack.c.l.b16 %v20
    %v58 = vunpack.c.l.b16 %v21
    %v59 = vunpack.c.l.b16 %v22
    %v60 = vunpack.c.l.b16 %v23
    %v61 = vunpack.c.l.b16 %v24
    %v62 = vpack.c.b16 %v55, %v54
    %v63 = vpack.c.b16 %v57, %v56
    %v64 = vpack.c.b16 %v59, %v58
    %v65 = vpack.c.b16 %v61, %v60
    %vm70 = vcmask 523264
    %v72 = vsel %vm70, %v16, 0
    %74 = vmatprep.subr.bf16.mxu0 0
    %75 = vmatpush1.bf16.msra.mxu0 %v62
    %76 = vmatprep.subr.bf16.mxu0 0
    %77 = vmatpush1.bf16.msra.mxu0 %v63
    %78 = vmatprep.subr.bf16.mxu0 0
    %79 = vmatpush1.bf16.msra.mxu0 %v64
    %80 = vmatprep.subr.bf16.mxu0 0
    %81 = vmatpush1.bf16.msra.mxu0 %v65
    %82 = vmatprep.subr.bf16.mxu0 0
    %83 = vmatpush1.bf16.msra.mxu0 0
    %84 = vmatprep.subr.bf16.mxu0 0
    %85 = vmatpush1.bf16.msra.mxu0 0
    %86 = vmatprep.subr.bf16.mxu0 0
    %87 = vmatpush1.bf16.msra.mxu0 0
    %88 = vmatprep.subr.bf16.mxu0 0
    %89 = vmatpush1.bf16.msra.mxu0 0
    %90 = vmatprep.subr.bf16.mxu0 0
    %91 = vmatpush1.bf16.msra.mxu0 0
    %92 = vmatprep.subr.bf16.mxu0 0
    %93 = vmatpush1.bf16.msra.mxu0 0
    %94 = vmatprep.subr.bf16.mxu0 0
    %95 = vmatpush1.bf16.msra.mxu0 0
    %96 = vmatprep.subr.bf16.mxu0 0
    %97 = vmatpush1.bf16.msra.mxu0 0
    %98 = vmatprep.subr.bf16.mxu0 0
    %99 = vmatpush1.bf16.msra.mxu0 0
    %100 = vmatprep.subr.bf16.mxu0 0
    %101 = vmatpush1.bf16.msra.mxu0 0
    %102 = vmatprep.subr.bf16.mxu0 0
    %103 = vmatpush1.bf16.msra.mxu0 0
    %104 = vmatprep.subr.bf16.mxu0 0
    %105 = vmatpush1.bf16.msra.mxu0 0
    %106 = vmatprep.mubr.bf16.mxu0 0
    %107 = vmatmul.mubr.bf16.gmra.mrb[0].mxu0 %v72
    %v108 = vpop.f32.mrb[0].mxu0
    %v109 = vadd.f32 %v45, %v108
    %v110 = vpop.f32.mrb[0].mxu0
    %v111 = vpop.f32.mrb[0].mxu0
    %v112 = vpop.f32.mrb[0].mxu0
    %113 = vdwg.mxu0
    %v114 = vsel %vm70, %v109, 0.0
    %v115 = vrot.slane %v114, 4
    %v116 = vadd.f32 %v114, %v115
    %v117 = vrot.slane %v116, 2
    %v118 = vadd.f32 %v116, %v117
    %v119 = vrot.slane %v118, 1
    %v120 = vadd.f32 %v118, %v119
    %v121 = vrcp.pop 8.0
    %v122 = vmul.f32 %v120, %v121
    %v123 = vmul.f32 %v109, %v109
    %v124 = vsel %vm70, %v123, 0.0
    %v125 = vrot.slane %v124, 4
    %v126 = vadd.f32 %v124, %v125
    %v127 = vrot.slane %v126, 2
    %v128 = vadd.f32 %v126, %v127
    %v129 = vrot.slane %v128, 1
    %v130 = vadd.f32 %v128, %v129
    %v131 = vmul.f32 %v130, %v121
    %v132 = vmul.f32 %v122, %v122
    %v133 = vsub.f32 %v131, %v132
    %v134 = vadd.f32 %v133, 1e-05
    %v135 = vrsqrt.pop %v134
    %v136 = vmul.f32 %v41, %v135
    %v137 = vmul.f32 %v122, %v136
    %v139 = vrot.slane %v137, 7
    %v141 = vsub.f32 %v41, %v139
    %v142 = vlaneseq
    %v143 = vshrl.u32 %v142, 7
    %v144 = vsub.s32 1, %v143
    %v145 = vrot.slane %v136, %v144
    %v146 = vmul.f32 %v109, %v145
    %v147 = vlaneseq
    %v148 = vshrl.u32 %v147, 7
    %v149 = vsub.s32 2, %v148
    %v150 = vrot.slane %v141, %v149
    %v151 = vadd.f32 %v146, %v150
    %v152 = vmax.f32 %v151, 0.0
    %v153 = vpack.c.bf16 %v152, %v152
    %v154 = vlaneseq
    %v155 = vshrl.u32 %v154, 7
    %v156 = vsub.s32 3, %v155
    %v157 = vrot.slane %v41, %v156
    %v166 = vunpack.c.l.b16 %v25
    %v167 = vunpack.c.l.b16 %v26
    %v168 = vunpack.c.l.b16 %v27
    %v169 = vunpack.c.l.b16 %v28
    %v170 = vunpack.c.l.b16 %v29
    %v171 = vunpack.c.l.b16 %v30
    %v172 = vunpack.c.l.b16 %v31
    %v173 = vunpack.c.l.b16 %v32
    %v174 = vpack.c.b16 %v167, %v166
    %v175 = vpack.c.b16 %v169, %v168
    %v176 = vpack.c.b16 %v171, %v170
    %v177 = vpack.c.b16 %v173, %v172
    %v183 = vsel %vm70, %v153, 0
    %185 = vmatprep.subr.bf16.mxu0 0
    %186 = vmatpush1.bf16.msra.mxu0 %v174
    %187 = vmatprep.subr.bf16.mxu0 0
    %188 = vmatpush1.bf16.msra.mxu0 %v175
    %189 = vmatprep.subr.bf16.mxu0 0
    %190 = vmatpush1.bf16.msra.mxu0 %v176
    %191 = vmatprep.subr.bf16.mxu0 0
    %192 = vmatpush1.bf16.msra.mxu0 %v177
    %193 = vmatprep.subr.bf16.mxu0 0
    %194 = vmatpush1.bf16.msra.mxu0 0
    %195 = vmatprep.subr.bf16.mxu0 0
    %196 = vmatpush1.bf16.msra.mxu0 0
    %197 = vmatprep.subr.bf16.mxu0 0
    %198 = vmatpush1.bf16.msra.mxu0 0
    %199 = vmatprep.subr.bf16.mxu0 0
    %200 = vmatpush1.bf16.msra.mxu0 0
    %201 = vmatprep.subr.bf16.mxu0 0
    %202 = vmatpush1.bf16.msra.mxu0 0
    %203 = vmatprep.subr.bf16.mxu0 0
    %204 = vmatpush1.bf16.msra.mxu0 0
    %205 = vmatprep.subr.bf16.mxu0 0
    %206 = vmatpush1.bf16.msra.mxu0 0
    %207 = vmatprep.subr.bf16.mxu0 0
    %208 = vmatpush1.bf16.msra.mxu0 0
    %209 = vmatprep.subr.bf16.mxu0 0
    %210 = vmatpush1.bf16.msra.mxu0 0
    %211 = vmatprep.subr.bf16.mxu0 0
    %212 = vmatpush1.bf16.msra.mxu0 0
    %213 = vmatprep.subr.bf16.mxu0 0
    %214 = vmatpush1.bf16.msra.mxu0 0
    %215 = vmatprep.subr.bf16.mxu0 0
    %216 = vmatpush1.bf16.msra.mxu0 0
    %217 = vmatprep.mubr.bf16.mxu0 0
    %218 = vmatmul.mubr.bf16.gmra.mrb[0].mxu0 %v183
    %v219 = vpop.f32.mrb[0].mxu0
    %v220 = vadd.f32 %v157, %v219
    %v221 = vpop.f32.mrb[0].mxu0
    %v222 = vpop.f32.mrb[0].mxu0
    %v223 = vpop.f32.mrb[0].mxu0
    %224 = vdwg.mxu0
    %v225 = vsel %vm70, %v220, 0.0
    %v226 = vrot.slane %v225, 4
    %v227 = vadd.f32 %v225, %v226
    %v228 = vrot.slane %v227, 2
    %v229 = vadd.f32 %v227, %v228
    %v230 = vrot.slane %v229, 1
    %v231 = vadd.f32 %v229, %v230
    %v232 = vmul.f32 %v231, %v121
    %v233 = vmul.f32 %v220, %v220
    %v234 = vsel %vm70, %v233, 0.0
    %v235 = vrot.slane %v234, 4
    %v236 = vadd.f32 %v234, %v235
    %v237 = vrot.slane %v236, 2
    %v238 = vadd.f32 %v236, %v237
    %v239 = vrot.slane %v238, 1
    %v240 = vadd.f32 %v238, %v239
    %v241 = vmul.f32 %v240, %v121
    %v242 = vmul.f32 %v232, %v232
    %v243 = vsub.f32 %v241, %v242
    %v244 = vadd.f32 %v243, 1e-05
    %v245 = vrsqrt.pop %v244
    %v246 = vmul.f32 %v41, %v245
    %v247 = vmul.f32 %v232, %v246
    %v249 = vrot.slane %v247, 7
    %v251 = vsub.f32 %v41, %v249
    %v252 = vlaneseq
    %v253 = vshrl.u32 %v252, 7
    %v254 = vsub.s32 4, %v253
    %v255 = vrot.slane %v246, %v254
    %v256 = vmul.f32 %v220, %v255
    %v257 = vlaneseq
    %v258 = vshrl.u32 %v257, 7
    %v259 = vsub.s32 5, %v258
    %v260 = vrot.slane %v251, %v259
    %v261 = vadd.f32 %v256, %v260
    %v262 = vmax.f32 %v261, 0.0
    %v263 = vpack.c.bf16 %v262, %v262
    %v264 = vlaneseq
    %v265 = vshrl.u32 %v264, 7
    %v266 = vsub.s32 6, %v265
    %v267 = vrot.slane %v41, %v266
    %v276 = vunpack.c.l.b16 %v33
    %v277 = vunpack.c.l.b16 %v34
    %v278 = vunpack.c.l.b16 %v35
    %v279 = vunpack.c.l.b16 %v36
    %v280 = vunpack.c.l.b16 %v37
    %v281 = vunpack.c.l.b16 %v38
    %v282 = vunpack.c.l.b16 %v39
    %v283 = vunpack.c.l.b16 %v40
    %v284 = vpack.c.b16 %v277, %v276
    %v285 = vpack.c.b16 %v279, %v278
    %v286 = vpack.c.b16 %v281, %v280
    %v287 = vpack.c.b16 %v283, %v282
    %v293 = vsel %vm70, %v263, 0
    %295 = vmatprep.subr.bf16.mxu0 0
    %296 = vmatpush1.bf16.msra.mxu0 %v284
    %297 = vmatprep.subr.bf16.mxu0 0
    %298 = vmatpush1.bf16.msra.mxu0 %v285
    %299 = vmatprep.subr.bf16.mxu0 0
    %300 = vmatpush1.bf16.msra.mxu0 %v286
    %301 = vmatprep.subr.bf16.mxu0 0
    %302 = vmatpush1.bf16.msra.mxu0 %v287
    %303 = vmatprep.subr.bf16.mxu0 0
    %304 = vmatpush1.bf16.msra.mxu0 0
    %305 = vmatprep.subr.bf16.mxu0 0
    %306 = vmatpush1.bf16.msra.mxu0 0
    %307 = vmatprep.subr.bf16.mxu0 0
    %308 = vmatpush1.bf16.msra.mxu0 0
    %309 = vmatprep.subr.bf16.mxu0 0
    %310 = vmatpush1.bf16.msra.mxu0 0
    %311 = vmatprep.subr.bf16.mxu0 0
    %312 = vmatpush1.bf16.msra.mxu0 0
    %313 = vmatprep.subr.bf16.mxu0 0
    %314 = vmatpush1.bf16.msra.mxu0 0
    %315 = vmatprep.subr.bf16.mxu0 0
    %316 = vmatpush1.bf16.msra.mxu0 0
    %317 = vmatprep.subr.bf16.mxu0 0
    %318 = vmatpush1.bf16.msra.mxu0 0
    %319 = vmatprep.subr.bf16.mxu0 0
    %320 = vmatpush1.bf16.msra.mxu0 0
    %321 = vmatprep.subr.bf16.mxu0 0
    %322 = vmatpush1.bf16.msra.mxu0 0
    %323 = vmatprep.subr.bf16.mxu0 0
    %324 = vmatpush1.bf16.msra.mxu0 0
    %325 = vmatprep.subr.bf16.mxu0 0
    %326 = vmatpush1.bf16.msra.mxu0 0
    %327 = vmatprep.mubr.bf16.mxu0 0
    %328 = vmatmul.mubr.bf16.gmra.mrb[0].mxu0 %v293
    %v329 = vpop.f32.mrb[0].mxu0
    %v330 = vadd.f32 %v267, %v329
    %v331 = vpop.f32.mrb[0].mxu0
    %v332 = vpop.f32.mrb[0].mxu0
    %v333 = vpop.f32.mrb[0].mxu0
    %334 = vdwg.mxu0
    %v335 = vlaneseq
    %v336 = vand.u32 %v335, 127
    %vm337 = vcmp.lt.s32.totalorder %v336, 8
    %v338 = vsel %vm337, %v330, -1e+30
    %v339 = vsel %vm70, %v338, -inf
    %340 = vmax.xlane.f32.xlu0 %v339
    %v341 = vpop.xlane.xlu0 %340
    %v342 = vsub.f32 %v330, %v341
    %v343 = vmul.f32 %v342, 1.442695
    %v344 = vpow.pop %v343
    %v345 = vsel %vm337, %v344, 0.0
    %v346 = vsel %vm70, %v345, 0.0
    %347 = vadd.xlane.f32.xlu0 %v346
    %v348 = vpop.xlane.xlu0 %347
    %v349 = vrcp.pop %v348
    %v350 = vmul.f32 %v344, %v349
    %v351 = vsub.f32 0.0, %v330
    %v352 = vmul.f32 %v351, 1.442695
    %v353 = vpow.pop %v352
    %v354 = vadd.f32 %v353, 1.0
    %v355 = vrcp.pop %v354
    %v356 = vmul.f32 1.0, %v355
    %v357 = vsel %vm337, %v350, %v356
    %358 = vst.msk [vmem:[#allocation2] sm:$0xff] %vm70, %v357
    // Predicated region
    $region14: #{tpu_custom_call.1} parent=1 // pred_check
      _
    $region15: #{tpu_custom_call.1} parent=1 // pred_check_branch
      %360 = sbr.rel (0) target = $region17
    $region16: #{tpu_custom_call.1} parent=1 // pred_region
      %s362 = ssub.s32 128, 128
      %363 = vsyncadd [#allocation3], %s362
      %s365 = sshll.u32 [#allocation2], 4
      %s366 = int_to_ptr.vmem [resolvable:$true] %s365
      %368 = dma.vmem_to_hbm [thread:$0]  %s366, 128, %s3, [#allocation3]
    $region17: #{tpu_custom_call.1} parent=1 // pred_fallthru
      _
    // Predicated region
    $region18: #{tpu_custom_call.1} parent=1 // pred_check
      _
    $region19: #{tpu_custom_call.1} parent=1 // pred_check_branch
      %370 = sbr.rel (0) target = $region21
    $region20: #{tpu_custom_call.1} parent=1 // pred_region
      %371 = dma.done [#allocation3], 128
    $region21: #{tpu_custom_call.1} parent=1 // pred_fallthru
      _
    %372 = vsyncpa [#allocation3], 1

</llo_original>
